<compile_context>
chip_gen: v7x
topology: tpu7x:2x2x1
jax: 0.10.0
libtpu: 0.0.40
codegen_flags: <defaults>
</compile_context>

<pallas_src>
import functools

import numpy as np
import jax
import jax.numpy as jnp
from jax import lax
from jax.experimental import pallas as pl
from jax.experimental.pallas import tpu as pltpu

IN_DIM = 8
OUT_DIM = 16
NUM_RELS = 4
NUM_BASES = 1
N_NODES = 16
NEG_SLOPE = 0.01      # F.leaky_relu default negative slope
PAD_COLS = 128        # lane-dense output slab width


def gat_kernel(h_ref, edge_ref, w_col_ref, w_row_ref, out_ref, *,
               out_dim, num_rels):
    h = h_ref[...]                                   # (N, Din) f32
    # Packed edges: 0 = no edge, r+1 = edge with relation r.  Widen once to i32.
    packed = edge_ref[...].astype(jnp.int32)         # (N_dst, N_src)
    adj = packed > 0                                 # boolean edge mask

    # MXU operands in bf16, f32 accumulation (review: drop HIGHEST).
    h_b = h.astype(jnp.bfloat16)

    # Fused node-side matmul (single MXU call):
    #   cols [0, out_dim)   -> z = fc(h)
    #   col  out_dim        -> attn_dst . h[d]   (dst attention term)
    #   cols > out_dim      -> exact zeros (w_col is zero-padded)
    hw = jnp.dot(h_b, w_col_ref[...].astype(jnp.bfloat16),
                 preferred_element_type=jnp.float32)          # (N, PAD_COLS)
    dst_part = hw[:, out_dim:out_dim + 1]                     # (N_dst, 1)

    # Fused source-side matmul: contract over the feature dim of both operands.
    #   row 0        -> attn_src . h[s]  per source node
    #   rows 1..R    -> h[s] . wrel[r]   scalar message per (relation, source)
    src_t = lax.dot_general(
        w_row_ref[...].astype(jnp.bfloat16), h_b,
        dimension_numbers=(((1,), (1,)), ((), ())),
        preferred_element_type=jnp.float32)                   # (8, N_src)
    src_part = src_t[0:1, :]                                   # (1, N_src)

    # edge_attention: e = leaky_relu(attn_fc(cat([h_src, h_dst], dim=1)))  (f32)
    scores = dst_part + src_part                               # (N_dst, N_src)
    e = jnp.where(scores > 0, scores, jnp.float32(NEG_SLOPE) * scores)

    # message_func: msg[d, s] = h[s] . wrel[we[d, s]]
    # Unrolled R-way select chain in (N_dst, N_src) layout (pure VALU work).
    msg = jnp.broadcast_to(src_t[1:2, :], scores.shape)        # relation 0
    for r in range(1, num_rels):
        msg = jnp.where(packed == r + 1, src_t[r + 1:r + 2, :], msg)

    # reduce_func: masked softmax over incoming edges, weighted sum of messages.
    e_masked = jnp.where(adj, e, jnp.float32(-1e30))
    e_max = jnp.max(e_masked, axis=1, keepdims=True)
    # NOTE: this mask is load-bearing: for fully-masked rows exp(e_masked-e_max)
    # is 1 everywhere; only the where() zeroes p.
    p = jnp.where(adj, jnp.exp(e_masked - e_max), jnp.float32(0.0))
    num = jnp.sum(p * msg, axis=1, keepdims=True)              # (N_dst, 1)
    denom = jnp.sum(p, axis=1, keepdims=True)
    # TODO(synk): DGL leaves zero-in-degree nodes' 'h' untouched by update_all;
    # this dense formulation writes 0 for them instead (guarded vs. 0/0 NaN).
    denom = jnp.maximum(denom, jnp.float32(1e-30))
    hnew = num * pl.reciprocal(denom, approx=True)             # (N_dst, 1)

    # Single lane-dense (N, PAD_COLS) store: cols [0,out_dim)=z (already in hw),
    # col out_dim=hnew, cols > out_dim already exact zeros.  One select only.
    lane = lax.broadcasted_iota(jnp.int32, hw.shape, 1)
    out_ref[...] = jnp.where(lane == out_dim, hnew, hw)


def build_fused_weights(fc_w, attn_w, w, w_comp, in_dim, out_dim,
                        num_rels, num_bases, pad_cols=PAD_COLS):
    # Exactly replicates message_func's weight construction.
    w_viewed = w.reshape(out_dim, num_bases, in_dim)              # torch .view
    weight_rel = jnp.matmul(w_comp, w_viewed)                     # (out_dim, R, in_dim)
    weight_rel = weight_rel.reshape(num_rels, out_dim, in_dim)    # torch .view
    wrel = weight_rel[:, 0, :]                                    # embed[0] -> (R, in_dim)

    a_src = attn_w[0, :in_dim]                                    # (in_dim,)
    a_dst = attn_w[0, in_dim:]                                    # (in_dim,)

    # Column-fused weight: hw = h @ w_col -> z in cols [0,out_dim), dst attention
    # term in col out_dim; zero-padded to 128 lanes for a lane-dense output.
    w_col = jnp.zeros((in_dim, pad_cols), jnp.float32)
    w_col = w_col.at[:, :out_dim].set(fc_w.T)
    w_col = w_col.at[:, out_dim].set(a_dst)

    # Row-fused weight: row 0 = src attention term, rows 1..R = per-relation
    # message vectors; padded to a sublane multiple.
    rows = -(-(1 + num_rels) // 8) * 8
    w_row = jnp.zeros((rows, in_dim), jnp.float32)
    w_row = w_row.at[0, :].set(a_src)
    w_row = w_row.at[1:1 + num_rels, :].set(wrel)
    return w_col, w_row


@jax.jit
def gat_forward(h, edge_packed, fc_w, attn_w, w, w_comp):
    n, in_dim = h.shape
    out_dim = fc_w.shape[0]
    num_rels, num_bases = w_comp.shape

    w_col, w_row = build_fused_weights(fc_w, attn_w, w, w_comp,
                                       in_dim, out_dim, num_rels, num_bases)

    vmem = lambda: pl.BlockSpec(memory_space=pltpu.MemorySpace.VMEM)
    out = pl.pallas_call(
        functools.partial(gat_kernel, out_dim=out_dim, num_rels=num_rels),
        out_shape=jax.ShapeDtypeStruct((n, PAD_COLS), jnp.float32),
        in_specs=[vmem(), vmem(), vmem(), vmem()],
        out_specs=vmem(),
    )(h, edge_packed, w_col, w_row)

    z = out[:, :out_dim]                       # g.ndata['z'] (kept for checking)
    hnew = out[:, out_dim:out_dim + 1]         # forward() return value, (N, 1)
    return hnew, z


if __name__ == "__main__":
    key = jax.random.PRNGKey(0)
    k1, k2, k3, k4, k5, k6 = jax.random.split(key, 6)

    # Node features
    h = jax.random.normal(k1, (N_NODES, IN_DIM), jnp.float32)

    # Deterministic graph: every node has >= 1 incoming edge.
    adj_np = np.zeros((N_NODES, N_NODES), np.float32)
    for d in range(N_NODES):
        adj_np[d, (d + 1) % N_NODES] = 1.0
        adj_np[d, (d + 5) % N_NODES] = 1.0
        adj_np[d, (d * 3 + 2) % N_NODES] = 1.0
    we_np = np.asarray(
        jax.random.randint(k2, (N_NODES, N_NODES), 0, NUM_RELS, dtype=jnp.int32))
    # Pack adjacency + relation id into one int8 tensor: 0=no edge, r+1=relation r.
    edge_packed = jnp.asarray(
        np.where(adj_np > 0, we_np + 1, 0).astype(np.int8))

    # Deterministic parameter init (shapes from GATLayer.__init__)
    gain = float(np.sqrt(2.0))  # nn.init.calculate_gain('relu')

    def xavier(kk, shape, fan_in, fan_out, g=1.0):
        bound = g * np.sqrt(6.0 / (fan_in + fan_out))
        return jax.random.uniform(kk, shape, jnp.float32, -bound, bound)

    fc_w = xavier(k3, (OUT_DIM, IN_DIM), IN_DIM, OUT_DIM)                # fc.weight
    attn_w = xavier(k4, (1, 2 * IN_DIM), 2 * IN_DIM, 1)                  # attn_fc.weight
    w = xavier(k5, (NUM_BASES, IN_DIM, OUT_DIM), IN_DIM, OUT_DIM, gain)  # self.w
    w_comp = xavier(k6, (NUM_RELS, NUM_BASES), NUM_BASES, NUM_RELS, gain)

    hnew, z = gat_forward(h, edge_packed, fc_w, attn_w, w, w_comp)
    hnew = jax.block_until_ready(hnew)
    z = jax.block_until_ready(z)

    # --- pure NumPy reference, following the PyTorch code edge-by-edge ---
    h_n = np.asarray(h)
    fc_n = np.asarray(fc_w); attn_n = np.asarray(attn_w)
    w_n = np.asarray(w); wc_n = np.asarray(w_comp)

    z_ref = h_n @ fc_n.T
    wv = w_n.reshape(OUT_DIM, NUM_BASES, IN_DIM)
    wr = np.matmul(wc_n, wv).reshape(NUM_RELS, OUT_DIM, IN_DIM)
    hn_ref = np.zeros((N_NODES, 1), np.float32)
    for d in range(N_NODES):
        srcs = [s for s in range(N_NODES) if adj_np[d, s] > 0]
        es, ms = [], []
        for s in srcs:
            z2 = np.concatenate([h_n[s], h_n[d]])           # cat([src, dst])
            a = float(attn_n[0] @ z2)                       # 1-D @ 1-D -> scalar
            es.append(a if a > 0 else NEG_SLOPE * a)        # leaky_relu
            wvec = wr[we_np[d, s]][0]                       # embed[0]
            ms.append(float(h_n[s] @ wvec))
        es = np.array(es, np.float64); ms = np.array(ms, np.float64)
        al = np.exp(es - es.max()); al = al / al.sum()
        hn_ref[d, 0] = np.sum(al * ms)

    # Tolerances sized for bf16 MXU operands (K=8 dots, f32 accumulation) plus
    # the EUP approximate reciprocal; bugs are O(0.1-1), this still catches them.
    assert np.allclose(np.asarray(z), z_ref, rtol=2e-2, atol=2e-2)
    assert np.allclose(np.asarray(hnew), hn_ref, rtol=2e-2, atol=2e-2)
    print("KERNEL_OK")
</pallas_src>

<mosaic_0001>
module attributes {stable_mosaic.version = 11 : i64} {
  func.func @gat_kernel(%arg0: memref<16x8xf32, #tpu.memory_space<vmem>>, %arg1: memref<16x16xi8, #tpu.memory_space<vmem>>, %arg2: memref<8x128xf32, #tpu.memory_space<vmem>>, %arg3: memref<8x8xf32, #tpu.memory_space<vmem>>, %arg4: memref<16x128xf32, #tpu.memory_space<vmem>>) attributes {dimension_semantics = [], scalar_prefetch = 0 : i64, scratch_operands = 0 : i64, tpu.core_type = #tpu.core_type<tc>} {
    %c0 = arith.constant 0 : index
    %c0_0 = arith.constant 0 : index
    %0 = vector.load %arg0[%c0, %c0_0] : memref<16x8xf32, #tpu.memory_space<vmem>>, vector<16x8xf32>
    %c0_1 = arith.constant 0 : index
    %c0_2 = arith.constant 0 : index
    %1 = vector.load %arg1[%c0_1, %c0_2] : memref<16x16xi8, #tpu.memory_space<vmem>>, vector<16x16xi8>
    %2 = arith.extsi %1 : vector<16x16xi8> to vector<16x16xi32>
    %c0_i32 = arith.constant 0 : i32
    %3 = vector.broadcast %c0_i32 : i32 to vector<16x16xi32>
    %4 = arith.cmpi sgt, %2, %3 : vector<16x16xi32>
    %5 = arith.truncf %0 : vector<16x8xf32> to vector<16x8xbf16>
    %c0_3 = arith.constant 0 : index
    %c0_4 = arith.constant 0 : index
    %6 = vector.load %arg2[%c0_3, %c0_4] : memref<8x128xf32, #tpu.memory_space<vmem>>, vector<8x128xf32>
    %7 = arith.truncf %6 : vector<8x128xf32> to vector<8x128xbf16>
    %cst = arith.constant dense<0.000000e+00> : vector<16x128xf32>
    %8 = tpu.matmul %5, %7, %cst {dimension_numbers = #tpu.dot_dimension_numbers<[1], [0], [0], [1], [0, 0, 1, 1], [], []>} : vector<16x8xbf16>, vector<8x128xbf16>, vector<16x128xf32> -> vector<16x128xf32>
    %9 = vector.extract_strided_slice %8 {offsets = [0, 16], sizes = [16, 1], strides = [1, 1]} : vector<16x128xf32> to vector<16x1xf32>
    %c0_5 = arith.constant 0 : index
    %c0_6 = arith.constant 0 : index
    %10 = vector.load %arg3[%c0_5, %c0_6] : memref<8x8xf32, #tpu.memory_space<vmem>>, vector<8x8xf32>
    %11 = arith.truncf %10 : vector<8x8xf32> to vector<8x8xbf16>
    %cst_7 = arith.constant dense<0.000000e+00> : vector<8x16xf32>
    %12 = tpu.matmul %11, %5, %cst_7 {dimension_numbers = #tpu.dot_dimension_numbers<[1], [1], [0], [0], [0, 0, 1, 0], [], []>} : vector<8x8xbf16>, vector<16x8xbf16>, vector<8x16xf32> -> vector<8x16xf32>
    %13 = vector.extract_strided_slice %12 {offsets = [0, 0], sizes = [1, 16], strides = [1, 1]} : vector<8x16xf32> to vector<1x16xf32>
    %14 = vector.broadcast %9 : vector<16x1xf32> to vector<16x16xf32>
    %15 = vector.broadcast %13 : vector<1x16xf32> to vector<16x16xf32>
    %16 = arith.addf %14, %15 : vector<16x16xf32>
    %cst_8 = arith.constant 0.000000e+00 : f32
    %17 = vector.broadcast %cst_8 : f32 to vector<16x16xf32>
    %18 = arith.cmpf ogt, %16, %17 : vector<16x16xf32>
    %cst_9 = arith.constant 0.00999999977 : f32
    %19 = vector.broadcast %cst_9 : f32 to vector<16x16xf32>
    %20 = arith.mulf %19, %16 : vector<16x16xf32>
    %21 = arith.select %18, %16, %20 : vector<16x16xi1>, vector<16x16xf32>
    %22 = vector.extract_strided_slice %12 {offsets = [1, 0], sizes = [1, 16], strides = [1, 1]} : vector<8x16xf32> to vector<1x16xf32>
    %23 = vector.shape_cast %22 : vector<1x16xf32> to vector<1x16xf32>
    %24 = vector.broadcast %23 : vector<1x16xf32> to vector<16x16xf32>
    %c2_i32 = arith.constant 2 : i32
    %25 = vector.broadcast %c2_i32 : i32 to vector<16x16xi32>
    %26 = arith.cmpi eq, %2, %25 : vector<16x16xi32>
    %27 = vector.extract_strided_slice %12 {offsets = [2, 0], sizes = [1, 16], strides = [1, 1]} : vector<8x16xf32> to vector<1x16xf32>
    %28 = vector.shape_cast %27 : vector<1x16xf32> to vector<1x16xf32>
    %29 = vector.broadcast %28 : vector<1x16xf32> to vector<16x16xf32>
    %30 = arith.select %26, %29, %24 : vector<16x16xi1>, vector<16x16xf32>
    %c3_i32 = arith.constant 3 : i32
    %31 = vector.broadcast %c3_i32 : i32 to vector<16x16xi32>
    %32 = arith.cmpi eq, %2, %31 : vector<16x16xi32>
    %33 = vector.extract_strided_slice %12 {offsets = [3, 0], sizes = [1, 16], strides = [1, 1]} : vector<8x16xf32> to vector<1x16xf32>
    %34 = vector.shape_cast %33 : vector<1x16xf32> to vector<1x16xf32>
    %35 = vector.broadcast %34 : vector<1x16xf32> to vector<16x16xf32>
    %36 = arith.select %32, %35, %30 : vector<16x16xi1>, vector<16x16xf32>
    %c4_i32 = arith.constant 4 : i32
    %37 = vector.broadcast %c4_i32 : i32 to vector<16x16xi32>
    %38 = arith.cmpi eq, %2, %37 : vector<16x16xi32>
    %39 = vector.extract_strided_slice %12 {offsets = [4, 0], sizes = [1, 16], strides = [1, 1]} : vector<8x16xf32> to vector<1x16xf32>
    %40 = vector.shape_cast %39 : vector<1x16xf32> to vector<1x16xf32>
    %41 = vector.broadcast %40 : vector<1x16xf32> to vector<16x16xf32>
    %42 = arith.select %38, %41, %36 : vector<16x16xi1>, vector<16x16xf32>
    %cst_10 = arith.constant -1.000000e+30 : f32
    %43 = vector.broadcast %cst_10 : f32 to vector<16x16xf32>
    %44 = arith.select %4, %21, %43 : vector<16x16xi1>, vector<16x16xf32>
    %cst_11 = arith.constant dense<0xFF800000> : vector<16xf32>
    %45 = vector.multi_reduction <maximumf>, %44, %cst_11 [1] : vector<16x16xf32> to vector<16xf32>
    %46 = vector.shape_cast %45 : vector<16xf32> to vector<16x1xf32>
    %47 = vector.broadcast %46 : vector<16x1xf32> to vector<16x16xf32>
    %48 = arith.subf %44, %47 : vector<16x16xf32>
    %49 = math.exp %48 : vector<16x16xf32>
    %cst_12 = arith.constant 0.000000e+00 : f32
    %50 = vector.broadcast %cst_12 : f32 to vector<16x16xf32>
    %51 = arith.select %4, %49, %50 : vector<16x16xi1>, vector<16x16xf32>
    %52 = arith.mulf %51, %42 : vector<16x16xf32>
    %cst_13 = arith.constant dense<0.000000e+00> : vector<16xf32>
    %53 = vector.multi_reduction <add>, %52, %cst_13 [1] : vector<16x16xf32> to vector<16xf32>
    %54 = vector.shape_cast %53 : vector<16xf32> to vector<16x1xf32>
    %cst_14 = arith.constant dense<0.000000e+00> : vector<16xf32>
    %55 = vector.multi_reduction <add>, %51, %cst_14 [1] : vector<16x16xf32> to vector<16xf32>
    %56 = vector.shape_cast %55 : vector<16xf32> to vector<16x1xf32>
    %cst_15 = arith.constant 1.000000e-30 : f32
    %57 = vector.broadcast %cst_15 : f32 to vector<16x1xf32>
    %58 = arith.maximumf %56, %57 : vector<16x1xf32>
    %59 = tpu.reciprocal %58 {approx = true} : vector<16x1xf32> -> vector<16x1xf32>
    %60 = arith.mulf %54, %59 : vector<16x1xf32>
    %61 = tpu.iota {dimensions = array<i32: 1>} : vector<16x128xi32>
    %c16_i32 = arith.constant 16 : i32
    %62 = vector.broadcast %c16_i32 : i32 to vector<16x128xi32>
    %63 = arith.cmpi eq, %61, %62 : vector<16x128xi32>
    %64 = vector.shape_cast %60 : vector<16x1xf32> to vector<16x1xf32>
    %65 = vector.broadcast %64 : vector<16x1xf32> to vector<16x128xf32>
    %66 = arith.select %63, %65, %8 : vector<16x128xi1>, vector<16x128xf32>
    %c0_16 = arith.constant 0 : index
    %c0_17 = arith.constant 0 : index
    %67 = vector.load %arg4[%c0_16, %c0_17] : memref<16x128xf32, #tpu.memory_space<vmem>>, vector<16x128xf32>
    tpu.vector_store %arg4[%c0_16, %c0_17], %66 {strides = array<i32>} : memref<16x128xf32, #tpu.memory_space<vmem>>, vector<16x128xf32>,
    return
  }
}

</mosaic_0001>

<llo_original>
// kernel: gat_forward.1
$region0: #{gat_forward.1}
  #allocation0 [shape = 'u32[]', space=smem, size = 0x4, offset = 0x4, fixed_abs, tag = 'smem constant byte address 0x4 - core index']
  #allocation1 [shape = 'u32[144,128]{1,0:T(1,128)}', space=vmem, size = 0x12000, scoped, tag = 'internal scratch']
  %s0 = inlined_call_operand.vmem [shape: f32[16,8], index: 0, kind: input, shape index: {}]
  %s1 = inlined_call_operand.vmem [shape: s8[16,16], index: 1, kind: input, shape index: {}]
  %s2 = inlined_call_operand.vmem [shape: f32[8,128], index: 2, kind: input, shape index: {}]
  %s3 = inlined_call_operand.vmem [shape: f32[8,8], index: 3, kind: input, shape index: {}]
  %s4 = inlined_call_operand.vmem [shape: f32[16,128], index: 4, kind: output, shape index: {}]
  %s5 = sld [smem:[#allocation0]]
  $region26: #{gat_forward.1} parent=0
    _
  %s7 = ssub.s32 1, %s5
  %s8 = scalar_select 0, %s7, %s5
  // Predicated region
  $region2: #{gat_forward.1} parent=0 // pred_check
    _
  $region3: #{gat_forward.1} parent=0 // pred_check_branch
    %10 = sbr.rel (0) target = $region5
  $region4: #{gat_forward.1} parent=0 // pred_region
    _
  $region5: #{gat_forward.1} parent=0 // pred_fallthru
    _
  // Predicated region
  $region6: #{gat_forward.1} parent=0 // pred_check
    _
  $region7: #{gat_forward.1} parent=0 // pred_check_branch
    %12 = sbr.rel (0) target = $region9
  $region8: #{gat_forward.1} parent=0 // pred_region
    _
  $region9: #{gat_forward.1} parent=0 // pred_fallthru
    _
  // Predicated region
  $region10: #{gat_forward.1} parent=0 // pred_check
    _
  $region11: #{gat_forward.1} parent=0 // pred_check_branch
    %14 = sbr.rel (0) target = $region13
  $region12: #{gat_forward.1} parent=0 // pred_region
    _
  $region13: #{gat_forward.1} parent=0 // pred_fallthru
    _
  // Predicated region
  $region14: #{gat_forward.1} parent=0 // pred_check
    _
  $region15: #{gat_forward.1} parent=0 // pred_check_branch
    %16 = sbr.rel (0) target = $region17
  $region16: #{gat_forward.1} parent=0 // pred_region
    _
  $region17: #{gat_forward.1} parent=0 // pred_fallthru
    _
  %v18 = vld [vmem:[%s0] sm:$0xff]
  %v19 = vld [vmem:[%s0 + $0x8] sm:$0xff]
  %v20 = vld [vmem:[%s1] sm:$0x3]
  %v21 = vld [vmem:[%s1 + $0x2] sm:$0x3]
  %v22 = vunpack.c.0.s8 %v20
  %v23 = vunpack.c.0.s8 %v21
  %vm24 = vcmp.gt.s32.totalorder %v22, 0
  %vm25 = vcmp.gt.s32.totalorder %v23, 0
  %v26 = vpack.c.bf16 %v19, %v18
  %v27 = vld [vmem:[%s2] sm:$0xff]
  %v28 = vpack.c.bf16 %v27, %v27
  %vm29 = vcmask 64512
  %v31 = vsel %vm29, %v26, 0
  %vm33 = vcmask 1043456
  %v35 = vsel %vm33, %v28, 0
  %37 = vmatprep.subr.bf16.mxu0 0
  %38 = vmatpush1.bf16.msra.mxu0 %v35
  %39 = vmatprep.subr.bf16.mxu0 0
  %40 = vmatpush1.bf16.msra.mxu0 0
  %41 = vmatprep.subr.bf16.mxu0 0
  %42 = vmatpush1.bf16.msra.mxu0 0
  %43 = vmatprep.subr.bf16.mxu0 0
  %44 = vmatpush1.bf16.msra.mxu0 0
  %45 = vmatprep.subr.bf16.mxu0 0
  %46 = vmatpush1.bf16.msra.mxu0 0
  %47 = vmatprep.subr.bf16.mxu0 0
  %48 = vmatpush1.bf16.msra.mxu0 0
  %49 = vmatprep.subr.bf16.mxu0 0
  %50 = vmatpush1.bf16.msra.mxu0 0
  %51 = vmatprep.subr.bf16.mxu0 0
  %52 = vmatpush1.bf16.msra.mxu0 0
  %53 = vmatprep.subr.bf16.mxu0 0
  %54 = vmatpush1.bf16.msra.mxu0 0
  %55 = vmatprep.subr.bf16.mxu0 0
  %56 = vmatpush1.bf16.msra.mxu0 0
  %57 = vmatprep.subr.bf16.mxu0 0
  %58 = vmatpush1.bf16.msra.mxu0 0
  %59 = vmatprep.subr.bf16.mxu0 0
  %60 = vmatpush1.bf16.msra.mxu0 0
  %61 = vmatprep.subr.bf16.mxu0 0
  %62 = vmatpush1.bf16.msra.mxu0 0
  %63 = vmatprep.subr.bf16.mxu0 0
  %64 = vmatpush1.bf16.msra.mxu0 0
  %65 = vmatprep.subr.bf16.mxu0 0
  %66 = vmatpush1.bf16.msra.mxu0 0
  %67 = vmatprep.subr.bf16.mxu0 0
  %68 = vmatpush1.bf16.msra.mxu0 0
  %69 = vmatprep.mubr.bf16.mxu0 0
  %70 = vmatmul.mubr.bf16.gmra.mrb[0].mxu0 %v31
  %v71 = vpop.f32.mrb[0].mxu0
  %v72 = vadd.f32 0.0, %v71
  %v73 = vpop.f32.mrb[0].mxu0
  %v74 = vpop.f32.mrb[0].mxu0
  %v75 = vadd.f32 0.0, %v74
  %v76 = vpop.f32.mrb[0].mxu0
  %77 = vdwg.mxu0
  %v78 = vld [vmem:[%s3] sm:$0xff]
  %v79 = vpack.c.bf16 %v78, %v78
  %v81 = vsel %vm29, %v79, 0
  %83 = vmatprep.subr.bf16.mxu0 0
  %84 = vmatpush1.bf16.xpose.msra.mxu0 %v31
  %85 = vmatprep.subr.bf16.mxu0 0
  %86 = vmatpush1.bf16.xpose.msra.mxu0 0
  %87 = vmatprep.subr.bf16.mxu0 0
  %88 = vmatpush1.bf16.xpose.msra.mxu0 0
  %89 = vmatprep.subr.bf16.mxu0 0
  %90 = vmatpush1.bf16.xpose.msra.mxu0 0
  %91 = vmatprep.subr.bf16.mxu0 0
  %92 = vmatpush1.bf16.xpose.msra.mxu0 0
  %93 = vmatprep.subr.bf16.mxu0 0
  %94 = vmatpush1.bf16.xpose.msra.mxu0 0
  %95 = vmatprep.subr.bf16.mxu0 0
  %96 = vmatpush1.bf16.xpose.msra.mxu0 0
  %97 = vmatprep.subr.bf16.mxu0 0
  %98 = vmatpush1.bf16.xpose.msra.mxu0 0
  %99 = vmatprep.subr.bf16.mxu0 0
  %100 = vmatpush1.bf16.xpose.msra.mxu0 0
  %101 = vmatprep.subr.bf16.mxu0 0
  %102 = vmatpush1.bf16.xpose.msra.mxu0 0
  %103 = vmatprep.subr.bf16.mxu0 0
  %104 = vmatpush1.bf16.xpose.msra.mxu0 0
  %105 = vmatprep.subr.bf16.mxu0 0
  %106 = vmatpush1.bf16.xpose.msra.mxu0 0
  %107 = vmatprep.subr.bf16.mxu0 0
  %108 = vmatpush1.bf16.xpose.msra.mxu0 0
  %109 = vmatprep.subr.bf16.mxu0 0
  %110 = vmatpush1.bf16.xpose.msra.mxu0 0
  %111 = vmatprep.subr.bf16.mxu0 0
  %112 = vmatpush1.bf16.xpose.msra.mxu0 0
  %113 = vmatprep.subr.bf16.mxu0 0
  %114 = vmatpush1.bf16.xpose.msra.mxu0 0
  %115 = vmatprep.mubr.bf16.mxu0 0
  %116 = vmatmul.mubr.bf16.gmra.mrb[0].mxu0 %v81
  %v117 = vpop.f32.mrb[0].mxu0
  %v118 = vadd.f32 0.0, %v117
  %v119 = vpop.f32.mrb[0].mxu0
  %v120 = vpop.f32.mrb[0].mxu0
  %v121 = vpop.f32.mrb[0].mxu0
  %122 = vdwg.mxu0
  %124 = vset.pattern.permute.xlu0 16
  %125 = vperm.xlu0 %124, %v72
  %v126 = vpop.permute.xlu0 %125
  %129 = vset.pattern.permute.xlu0 16
  %130 = vperm.xlu0 %129, %v75
  %v131 = vpop.permute.xlu0 %130
  %v133 = vlaneseq
  %v134 = vshrl.u32 %v133, 7
  %v135 = vsub.s32 0, %v134
  %v136 = vrot.slane %v118, %v135
  %v137 = vadd.f32 %v126, %v136
  %v138 = vadd.f32 %v131, %v136
  %vm139 = vcmp.gt.f32.partialorder %v137, 0.0
  %vm140 = vcmp.gt.f32.partialorder %v138, 0.0
  %v141 = vmul.f32 %v137, 0.01
  %v142 = vmul.f32 %v138, 0.01
  %v143 = vsel %vm139, %v137, %v141
  %v144 = vsel %vm140, %v138, %v142
  %v145 = vlaneseq
  %v146 = vshrl.u32 %v145, 7
  %v147 = vsub.s32 1, %v146
  %v148 = vrot.slane %v118, %v147
  %vm149 = vcmp.eq.s32.totalorder %v22, 2
  %vm150 = vcmp.eq.s32.totalorder %v23, 2
  %v151 = vlaneseq
  %v152 = vshrl.u32 %v151, 7
  %v153 = vsub.s32 2, %v152
  %v154 = vrot.slane %v118, %v153
  %v155 = vsel %vm149, %v154, %v148
  %v156 = vsel %vm150, %v154, %v148
  %vm157 = vcmp.eq.s32.totalorder %v22, 3
  %vm158 = vcmp.eq.s32.totalorder %v23, 3
  %v159 = vlaneseq
  %v160 = vshrl.u32 %v159, 7
  %v161 = vsub.s32 3, %v160
  %v162 = vrot.slane %v118, %v161
  %v163 = vsel %vm157, %v162, %v155
  %v164 = vsel %vm158, %v162, %v156
  %vm165 = vcmp.eq.s32.totalorder %v22, 4
  %vm166 = vcmp.eq.s32.totalorder %v23, 4
  %v167 = vlaneseq
  %v168 = vshrl.u32 %v167, 7
  %v169 = vsub.s32 4, %v168
  %v170 = vrot.slane %v118, %v169
  %v171 = vsel %vm165, %v170, %v163
  %v172 = vsel %vm166, %v170, %v164
  %v173 = vsel %vm24, %v143, -1e+30
  %v174 = vsel %vm25, %v144, -1e+30
  %vm175 = vcmask 130048
  %v176 = vsel %vm175, %v173, -inf
  %177 = vmax.xlane.f32.xlu0 %v176
  %v178 = vpop.xlane.xlu0 %177
  %v179 = vsel %vm175, %v174, -inf
  %180 = vmax.xlane.f32.xlu0 %v179
  %v181 = vpop.xlane.xlu0 %180
  %v182 = vsub.f32 %v173, %v178
  %v183 = vsub.f32 %v174, %v181
  %v184 = vmul.f32 %v182, 1.442695
  %v185 = vpow.pop %v184
  %v186 = vmul.f32 %v183, 1.442695
  %v187 = vpow.pop %v186
  %v188 = vsel %vm24, %v185, 0.0
  %v189 = vsel %vm25, %v187, 0.0
  %v190 = vmul.f32 %v188, %v171
  %v191 = vmul.f32 %v189, %v172
  %v192 = vsel %vm175, %v190, 0.0
  %193 = vadd.xlane.f32.xlu0 %v192
  %v194 = vpop.xlane.xlu0 %193
  %v195 = vsel %vm175, %v191, 0.0
  %196 = vadd.xlane.f32.xlu0 %v195
  %v197 = vpop.xlane.xlu0 %196
  %v198 = vsel %vm175, %v188, 0.0
  %199 = vadd.xlane.f32.xlu0 %v198
  %v200 = vpop.xlane.xlu0 %199
  %v201 = vsel %vm175, %v189, 0.0
  %202 = vadd.xlane.f32.xlu0 %v201
  %v203 = vpop.xlane.xlu0 %202
  %v204 = vmax.f32 %v200, 1e-30
  %v205 = vmax.f32 %v203, 1e-30
  %v206 = vrcp.pop %v204
  %v207 = vrcp.pop %v205
  %v208 = vmul.f32 %v194, %v206
  %v209 = vmul.f32 %v197, %v207
  %v210 = vlaneseq
  %v211 = vand.u32 %v210, 127
  %vm212 = vcmp.eq.s32.totalorder %v211, 16
  %v213 = vsel %vm212, %v208, %v72
  %v214 = vsel %vm212, %v209, %v75
  %215 = vst [vmem:[%s4] sm:$0xff] %v213
  %216 = vst [vmem:[%s4 + $0x8] sm:$0xff] %v214
  // Predicated region
  $region18: #{gat_forward.1} parent=0 // pred_check
    _
  $region19: #{gat_forward.1} parent=0 // pred_check_branch
    %218 = sbr.rel (0) target = $region21
  $region20: #{gat_forward.1} parent=0 // pred_region
    _
  $region21: #{gat_forward.1} parent=0 // pred_fallthru
    _
  // Predicated region
  $region22: #{gat_forward.1} parent=0 // pred_check
    _
  $region23: #{gat_forward.1} parent=0 // pred_check_branch
    %220 = sbr.rel (0) target = $region25
  $region24: #{gat_forward.1} parent=0 // pred_region
    _
  $region25: #{gat_forward.1} parent=0 // pred_fallthru
    _

</llo_original>
